<compile_context>
chip_gen: v6e
topology: v6e:2x2x1
jax: 0.10.0
libtpu: 0.0.40
codegen_flags: <defaults>
</compile_context>

<pallas_src>
import functools

import jax
import jax.numpy as jnp
from jax import lax
from jax.experimental import pallas as pl
from jax.experimental.pallas import tpu as pltpu


_NEG_BIG = -1e30  # exp(_NEG_BIG - anything_reasonable) underflows to exactly 0 in f32


def _distill_kl_kernel(ys_ref, yt_ref, out_ref,
                       m_s_ref, s_s_ref, m_t_ref, s_t_ref, cross_ref,
                       *, inv_T, batch, num_classes, block_rows, block_cols):
    i = pl.program_id(0)           # row (batch) tile  -- "parallel"
    c = pl.program_id(1)           # class tile        -- "arbitrary" (reduction)
    nc = pl.num_programs(1)

    @pl.when(c == 0)
    def _init():
        m_s_ref[...] = jnp.full_like(m_s_ref, -jnp.inf)
        m_t_ref[...] = jnp.full_like(m_t_ref, -jnp.inf)
        s_s_ref[...] = jnp.zeros_like(s_s_ref)
        s_t_ref[...] = jnp.zeros_like(s_t_ref)
        cross_ref[...] = jnp.zeros_like(cross_ref)

    ys = ys_ref[...].astype(jnp.float32) * inv_T
    yt = yt_ref[...].astype(jnp.float32) * inv_T

    # Mask padded class columns of a partial last class tile so they contribute
    # exactly 0 to max / sum / cross.  Statically skipped when C tiles evenly.
    if num_classes % block_cols != 0:
        col = c * block_cols + lax.broadcasted_iota(jnp.int32, ys.shape, 1)
        valid = col < num_classes
        ys = jnp.where(valid, ys, _NEG_BIG)
        yt = jnp.where(valid, yt, _NEG_BIG)

    # --- teacher: online softmax stats + cross term ---------------------------
    #   cross = sum_j exp(yt_j - m_t) * (yt_j - ys_j)   (rescaled as m_t grows)
    m_t_old = m_t_ref[...]
    m_t_new = jnp.maximum(m_t_old, jnp.max(yt, axis=-1, keepdims=True))
    a_t = jnp.exp(m_t_old - m_t_new)
    e_t = jnp.exp(yt - m_t_new)
    s_t_ref[...] = a_t * s_t_ref[...] + jnp.sum(e_t, axis=-1, keepdims=True)
    cross_ref[...] = a_t * cross_ref[...] + jnp.sum(
        e_t * (yt - ys), axis=-1, keepdims=True)
    m_t_ref[...] = m_t_new

    # --- student: online log-sum-exp stats ------------------------------------
    m_s_old = m_s_ref[...]
    m_s_new = jnp.maximum(m_s_old, jnp.max(ys, axis=-1, keepdims=True))
    a_s = jnp.exp(m_s_old - m_s_new)
    s_s_ref[...] = a_s * s_s_ref[...] + jnp.sum(
        jnp.exp(ys - m_s_new), axis=-1, keepdims=True)
    m_s_ref[...] = m_s_new

    # --- finalize on the last class tile --------------------------------------
    @pl.when(c == nc - 1)
    def _finalize():
        s_t = s_t_ref[...]
        # Per-row KL (sum_j p_t p_s-free fused form):
        #   cross / s_t + (m_s - m_t) + log(s_s) - log(s_t)
        loss_row = (cross_ref[...] * pl.reciprocal(s_t, approx=False)
                    + (m_s_ref[...] - m_t_ref[...])
                    + jnp.log(s_s_ref[...]) - jnp.log(s_t))
        # Mask rows past the true batch (only needed when B % block_rows != 0;
        # jnp.where *selects*, so padded-row garbage/NaN never reaches the sum).
        if batch % block_rows != 0:
            row_ids = i * block_rows + lax.broadcasted_iota(
                jnp.int32, loss_row.shape, 0)
            loss_row = jnp.where(row_ids < batch, loss_row, 0.0)
        out_ref[...] = jnp.broadcast_to(jnp.sum(loss_row), out_ref.shape)


def _vmem_limits():
    """Generation-aware (physical_vmem, vmem_limit_bytes)."""
    phys = None
    try:
        info = pltpu.get_tpu_info()
        phys = int(getattr(info, "vmem_capacity_bytes", 0)) or None
    except Exception:
        phys = None
    if phys is None:
        phys = 64 * 1024 * 1024                 # conservative fallback (v7x-class)
    if phys <= 64 * 1024 * 1024:                # v7x: 64 MiB per TensorCore
        limit = 48 * 1024 * 1024
    else:                                       # v5e / v6e: 128 MiB physical
        limit = 64 * 1024 * 1024
    limit = min(limit, max(16 * 1024 * 1024, phys - 16 * 1024 * 1024))
    return phys, limit


def _pick_tiles(B, C, itemsize_s, itemsize_t, vmem_limit,
                block_rows=None, block_cols=None):
    in_itemsize = max(itemsize_s, itemsize_t)
    # dtype-native sublane multiple: f32 -> 8, bf16 -> 16, int8/fp8 -> 32
    sub = 32 // min(itemsize_s, itemsize_t)

    if block_cols is None:
        # Keep the whole class axis when it is modest; tile it (128-multiples)
        # for vocab-scale C so block_rows stays large.
        block_cols = C if C <= 4096 else 2048
    block_cols = int(block_cols)
    if block_cols >= C:
        block_cols = C
    else:
        block_cols = max(128, (block_cols // 128) * 128)

    if block_rows is None:
        # Per-grid-step VMEM model:
        #   2 inputs x 2 pipeline buffers at input dtype
        #   + ~5 live f32 copies of the (rows, cols) tile (casts/exp/products)
        #   + 5 per-row f32 scratch columns (padded to 128 lanes).
        bytes_per_row = block_cols * (2 * 2 * in_itemsize + 5 * 4) + 5 * 128 * 4
        budget = int(vmem_limit * 0.7)
        tb = budget // max(1, bytes_per_row)
        tb = max(sub, min(1024, (tb // sub) * sub))
        block_rows = B if B <= tb else tb
    block_rows = min(int(block_rows), B)
    if block_rows < B:
        block_rows = max(sub, (block_rows // sub) * sub)
    return block_rows, block_cols


def distill_kl(y_s, y_t, T, *, block_rows=None, block_cols=None):
    """Pallas implementation of DistillKL.forward. Returns a scalar float32."""
    assert y_s.shape == y_t.shape and y_s.ndim == 2
    B, C = y_s.shape
    itemsize_s = jnp.dtype(y_s.dtype).itemsize
    itemsize_t = jnp.dtype(y_t.dtype).itemsize

    _, vmem_limit = _vmem_limits()
    block_rows, block_cols = _pick_tiles(
        B, C, itemsize_s, itemsize_t, vmem_limit,
        block_rows=block_rows, block_cols=block_cols)

    grid = (pl.cdiv(B, block_rows), pl.cdiv(C, block_cols))

    kernel = functools.partial(
        _distill_kl_kernel,
        inv_T=1.0 / float(T),
        batch=B,
        num_classes=C,
        block_rows=block_rows,
        block_cols=block_cols,
    )

    partials = pl.pallas_call(
        kernel,
        out_shape=jax.ShapeDtypeStruct((grid[0], 8, 128), jnp.float32),
        grid=grid,
        in_specs=[
            pl.BlockSpec((block_rows, block_cols), lambda i, c: (i, c)),
            pl.BlockSpec((block_rows, block_cols), lambda i, c: (i, c)),
        ],
        out_specs=pl.BlockSpec((1, 8, 128), lambda i, c: (i, 0, 0)),
        scratch_shapes=[pltpu.VMEM((block_rows, 1), jnp.float32)
                        for _ in range(5)],
        compiler_params=pltpu.CompilerParams(
            dimension_semantics=("parallel", "arbitrary"),
            vmem_limit_bytes=int(vmem_limit),
        ),
    )(y_s, y_t)

    # Tiny final reduction over per-row-tile partials + PyTorch scaling.
    return jnp.sum(partials[:, 0, 0]) * (float(T) * float(T) / B)


def _reference(y_s, y_t, T):
    ps = jax.nn.log_softmax(y_s / T, axis=1)
    pt = jax.nn.softmax(y_t / T, axis=1)
    log_pt = jax.nn.log_softmax(y_t / T, axis=1)
    return jnp.sum(pt * (log_pt - ps)) * T * T / y_s.shape[0]


if __name__ == "__main__":
    T = 4.0
    key = jax.random.PRNGKey(0)
    k1, k2, k3, k4, k5, k6 = jax.random.split(key, 6)

    # 1) Small single-block case (matches the toy module usage): B=2, C=16.
    y_s = jax.random.normal(k1, (2, 16), dtype=jnp.float32)
    y_t = jax.random.normal(k2, (2, 16), dtype=jnp.float32)
    loss = jax.block_until_ready(distill_kl(y_s, y_t, T))
    ref = _reference(y_s, y_t, T)
    assert jnp.allclose(loss, ref, rtol=1e-4, atol=1e-5), (loss, ref)

    # 2) Multi-row-tile path with a masked remainder row tile and bf16 inputs
    #    (exercises pipelined grid + bf16 16-row sublane rounding + row mask).
    y_s2 = jax.random.normal(k3, (50, 160), dtype=jnp.bfloat16)
    y_t2 = jax.random.normal(k4, (50, 160), dtype=jnp.bfloat16)
    loss2 = jax.block_until_ready(distill_kl(y_s2, y_t2, T, block_rows=16))
    ref2 = _reference(y_s2.astype(jnp.float32), y_t2.astype(jnp.float32), T)
    assert jnp.allclose(loss2, ref2, rtol=2e-4, atol=1e-5), (loss2, ref2)

    # 3) Class-axis tiling path (online-softmax accumulation) with a masked
    #    partial last class tile; B divides block_rows so the row mask is
    #    statically skipped.
    y_s3 = jax.random.normal(k5, (24, 300), dtype=jnp.float32)
    y_t3 = jax.random.normal(k6, (24, 300), dtype=jnp.float32)
    loss3 = jax.block_until_ready(
        distill_kl(y_s3, y_t3, T, block_rows=8, block_cols=128))
    ref3 = _reference(y_s3, y_t3, T)
    assert jnp.allclose(loss3, ref3, rtol=1e-4, atol=1e-5), (loss3, ref3)

    print("KERNEL_OK")
</pallas_src>

<mosaic_0001>
module attributes {stable_mosaic.version = 11 : i64} {
  func.func @_distill_kl_kernel(%arg0: i32, %arg1: i32, %arg2: memref<2x16xf32, #tpu.memory_space<vmem>>, %arg3: memref<2x16xf32, #tpu.memory_space<vmem>>, %arg4: memref<1x8x128xf32, #tpu.memory_space<vmem>>, %arg5: memref<2x1xf32, #tpu.memory_space<vmem>>, %arg6: memref<2x1xf32, #tpu.memory_space<vmem>>, %arg7: memref<2x1xf32, #tpu.memory_space<vmem>>, %arg8: memref<2x1xf32, #tpu.memory_space<vmem>>, %arg9: memref<2x1xf32, #tpu.memory_space<vmem>>) attributes {dimension_semantics = [#tpu.dimension_semantics<parallel>, #tpu.dimension_semantics<arbitrary>], iteration_bounds = array<i64: 1, 1>, scalar_prefetch = 0 : i64, scratch_operands = 5 : i64, tpu.core_type = #tpu.core_type<tc>, window_params = [{transform_indices = @transform_0, window_bounds = array<i64: 2, 16>}, {transform_indices = @transform_1, window_bounds = array<i64: 2, 16>}, {transform_indices = @transform_2, window_bounds = array<i64: 1, 8, 128>}]} {
    %c0_i32 = arith.constant 0 : i32
    %0 = arith.cmpi eq, %arg1, %c0_i32 : i32
    %1 = arith.extui %0 : i1 to i32
    %c0_i32_0 = arith.constant 0 : i32
    %2 = arith.cmpi ne, %1, %c0_i32_0 : i32
    scf.if %2 {
      %cst_32 = arith.constant 0xFF800000 : f32
      %52 = vector.broadcast %cst_32 : f32 to vector<2x1xf32>
      %c0_33 = arith.constant 0 : index
      %c0_34 = arith.constant 0 : index
      %53 = vector.load %arg5[%c0_33, %c0_34] : memref<2x1xf32, #tpu.memory_space<vmem>>, vector<2x1xf32>
      tpu.vector_store %arg5[%c0_33, %c0_34], %52 {strides = array<i32>} : memref<2x1xf32, #tpu.memory_space<vmem>>, vector<2x1xf32>,
      %cst_35 = arith.constant 0xFF800000 : f32
      %54 = vector.broadcast %cst_35 : f32 to vector<2x1xf32>
      %c0_36 = arith.constant 0 : index
      %c0_37 = arith.constant 0 : index
      %55 = vector.load %arg7[%c0_36, %c0_37] : memref<2x1xf32, #tpu.memory_space<vmem>>, vector<2x1xf32>
      tpu.vector_store %arg7[%c0_36, %c0_37], %54 {strides = array<i32>} : memref<2x1xf32, #tpu.memory_space<vmem>>, vector<2x1xf32>,
      %cst_38 = arith.constant 0.000000e+00 : f32
      %56 = vector.broadcast %cst_38 : f32 to vector<2x1xf32>
      %c0_39 = arith.constant 0 : index
      %c0_40 = arith.constant 0 : index
      %57 = vector.load %arg6[%c0_39, %c0_40] : memref<2x1xf32, #tpu.memory_space<vmem>>, vector<2x1xf32>
      tpu.vector_store %arg6[%c0_39, %c0_40], %56 {strides = array<i32>} : memref<2x1xf32, #tpu.memory_space<vmem>>, vector<2x1xf32>,
      %cst_41 = arith.constant 0.000000e+00 : f32
      %58 = vector.broadcast %cst_41 : f32 to vector<2x1xf32>
      %c0_42 = arith.constant 0 : index
      %c0_43 = arith.constant 0 : index
      %59 = vector.load %arg8[%c0_42, %c0_43] : memref<2x1xf32, #tpu.memory_space<vmem>>, vector<2x1xf32>
      tpu.vector_store %arg8[%c0_42, %c0_43], %58 {strides = array<i32>} : memref<2x1xf32, #tpu.memory_space<vmem>>, vector<2x1xf32>,
      %cst_44 = arith.constant 0.000000e+00 : f32
      %60 = vector.broadcast %cst_44 : f32 to vector<2x1xf32>
      %c0_45 = arith.constant 0 : index
      %c0_46 = arith.constant 0 : index
      %61 = vector.load %arg9[%c0_45, %c0_46] : memref<2x1xf32, #tpu.memory_space<vmem>>, vector<2x1xf32>
      tpu.vector_store %arg9[%c0_45, %c0_46], %60 {strides = array<i32>} : memref<2x1xf32, #tpu.memory_space<vmem>>, vector<2x1xf32>,
    } else {
    }
    %c0 = arith.constant 0 : index
    %c0_1 = arith.constant 0 : index
    %3 = vector.load %arg2[%c0, %c0_1] : memref<2x16xf32, #tpu.memory_space<vmem>>, vector<2x16xf32>
    %cst = arith.constant 2.500000e-01 : f32
    %4 = vector.broadcast %cst : f32 to vector<2x16xf32>
    %5 = arith.mulf %3, %4 : vector<2x16xf32>
    %c0_2 = arith.constant 0 : index
    %c0_3 = arith.constant 0 : index
    %6 = vector.load %arg3[%c0_2, %c0_3] : memref<2x16xf32, #tpu.memory_space<vmem>>, vector<2x16xf32>
    %cst_4 = arith.constant 2.500000e-01 : f32
    %7 = vector.broadcast %cst_4 : f32 to vector<2x16xf32>
    %8 = arith.mulf %6, %7 : vector<2x16xf32>
    %c0_5 = arith.constant 0 : index
    %c0_6 = arith.constant 0 : index
    %9 = vector.load %arg7[%c0_5, %c0_6] : memref<2x1xf32, #tpu.memory_space<vmem>>, vector<2x1xf32>
    %cst_7 = arith.constant dense<0xFF800000> : vector<2xf32>
    %10 = vector.multi_reduction <maximumf>, %8, %cst_7 [1] : vector<2x16xf32> to vector<2xf32>
    %11 = vector.shape_cast %10 : vector<2xf32> to vector<2x1xf32>
    %12 = arith.maximumf %9, %11 : vector<2x1xf32>
    %13 = arith.subf %9, %12 : vector<2x1xf32>
    %14 = math.exp %13 : vector<2x1xf32>
    %15 = vector.broadcast %12 : vector<2x1xf32> to vector<2x16xf32>
    %16 = arith.subf %8, %15 : vector<2x16xf32>
    %17 = math.exp %16 : vector<2x16xf32>
    %c0_8 = arith.constant 0 : index
    %c0_9 = arith.constant 0 : index
    %18 = vector.load %arg8[%c0_8, %c0_9] : memref<2x1xf32, #tpu.memory_space<vmem>>, vector<2x1xf32>
    %19 = arith.mulf %14, %18 : vector<2x1xf32>
    %cst_10 = arith.constant dense<0.000000e+00> : vector<2xf32>
    %20 = vector.multi_reduction <add>, %17, %cst_10 [1] : vector<2x16xf32> to vector<2xf32>
    %21 = vector.shape_cast %20 : vector<2xf32> to vector<2x1xf32>
    %22 = arith.addf %19, %21 : vector<2x1xf32>
    %c0_11 = arith.constant 0 : index
    %c0_12 = arith.constant 0 : index
    %23 = vector.load %arg8[%c0_11, %c0_12] : memref<2x1xf32, #tpu.memory_space<vmem>>, vector<2x1xf32>
    tpu.vector_store %arg8[%c0_11, %c0_12], %22 {strides = array<i32>} : memref<2x1xf32, #tpu.memory_space<vmem>>, vector<2x1xf32>,
    %c0_13 = arith.constant 0 : index
    %c0_14 = arith.constant 0 : index
    %24 = vector.load %arg9[%c0_13, %c0_14] : memref<2x1xf32, #tpu.memory_space<vmem>>, vector<2x1xf32>
    %25 = arith.mulf %14, %24 : vector<2x1xf32>
    %26 = arith.subf %8, %5 : vector<2x16xf32>
    %27 = arith.mulf %17, %26 : vector<2x16xf32>
    %cst_15 = arith.constant dense<0.000000e+00> : vector<2xf32>
    %28 = vector.multi_reduction <add>, %27, %cst_15 [1] : vector<2x16xf32> to vector<2xf32>
    %29 = vector.shape_cast %28 : vector<2xf32> to vector<2x1xf32>
    %30 = arith.addf %25, %29 : vector<2x1xf32>
    %c0_16 = arith.constant 0 : index
    %c0_17 = arith.constant 0 : index
    %31 = vector.load %arg9[%c0_16, %c0_17] : memref<2x1xf32, #tpu.memory_space<vmem>>, vector<2x1xf32>
    tpu.vector_store %arg9[%c0_16, %c0_17], %30 {strides = array<i32>} : memref<2x1xf32, #tpu.memory_space<vmem>>, vector<2x1xf32>,
    %c0_18 = arith.constant 0 : index
    %c0_19 = arith.constant 0 : index
    %32 = vector.load %arg7[%c0_18, %c0_19] : memref<2x1xf32, #tpu.memory_space<vmem>>, vector<2x1xf32>
    tpu.vector_store %arg7[%c0_18, %c0_19], %12 {strides = array<i32>} : memref<2x1xf32, #tpu.memory_space<vmem>>, vector<2x1xf32>,
    %c0_20 = arith.constant 0 : index
    %c0_21 = arith.constant 0 : index
    %33 = vector.load %arg5[%c0_20, %c0_21] : memref<2x1xf32, #tpu.memory_space<vmem>>, vector<2x1xf32>
    %cst_22 = arith.constant dense<0xFF800000> : vector<2xf32>
    %34 = vector.multi_reduction <maximumf>, %5, %cst_22 [1] : vector<2x16xf32> to vector<2xf32>
    %35 = vector.shape_cast %34 : vector<2xf32> to vector<2x1xf32>
    %36 = arith.maximumf %33, %35 : vector<2x1xf32>
    %37 = arith.subf %33, %36 : vector<2x1xf32>
    %38 = math.exp %37 : vector<2x1xf32>
    %c0_23 = arith.constant 0 : index
    %c0_24 = arith.constant 0 : index
    %39 = vector.load %arg6[%c0_23, %c0_24] : memref<2x1xf32, #tpu.memory_space<vmem>>, vector<2x1xf32>
    %40 = arith.mulf %38, %39 : vector<2x1xf32>
    %41 = vector.broadcast %36 : vector<2x1xf32> to vector<2x16xf32>
    %42 = arith.subf %5, %41 : vector<2x16xf32>
    %43 = math.exp %42 : vector<2x16xf32>
    %cst_25 = arith.constant dense<0.000000e+00> : vector<2xf32>
    %44 = vector.multi_reduction <add>, %43, %cst_25 [1] : vector<2x16xf32> to vector<2xf32>
    %45 = vector.shape_cast %44 : vector<2xf32> to vector<2x1xf32>
    %46 = arith.addf %40, %45 : vector<2x1xf32>
    %c0_26 = arith.constant 0 : index
    %c0_27 = arith.constant 0 : index
    %47 = vector.load %arg6[%c0_26, %c0_27] : memref<2x1xf32, #tpu.memory_space<vmem>>, vector<2x1xf32>
    tpu.vector_store %arg6[%c0_26, %c0_27], %46 {strides = array<i32>} : memref<2x1xf32, #tpu.memory_space<vmem>>, vector<2x1xf32>,
    %c0_28 = arith.constant 0 : index
    %c0_29 = arith.constant 0 : index
    %48 = vector.load %arg5[%c0_28, %c0_29] : memref<2x1xf32, #tpu.memory_space<vmem>>, vector<2x1xf32>
    tpu.vector_store %arg5[%c0_28, %c0_29], %36 {strides = array<i32>} : memref<2x1xf32, #tpu.memory_space<vmem>>, vector<2x1xf32>,
    %c0_i32_30 = arith.constant 0 : i32
    %49 = arith.cmpi eq, %arg1, %c0_i32_30 : i32
    %50 = arith.extui %49 : i1 to i32
    %c0_i32_31 = arith.constant 0 : i32
    %51 = arith.cmpi ne, %50, %c0_i32_31 : i32
    scf.if %51 {
      %c0_32 = arith.constant 0 : index
      %c0_33 = arith.constant 0 : index
      %52 = vector.load %arg8[%c0_32, %c0_33] : memref<2x1xf32, #tpu.memory_space<vmem>>, vector<2x1xf32>
      %c0_34 = arith.constant 0 : index
      %c0_35 = arith.constant 0 : index
      %53 = vector.load %arg9[%c0_34, %c0_35] : memref<2x1xf32, #tpu.memory_space<vmem>>, vector<2x1xf32>
      %54 = tpu.reciprocal %52 : vector<2x1xf32> -> vector<2x1xf32>
      %55 = arith.mulf %53, %54 : vector<2x1xf32>
      %c0_36 = arith.constant 0 : index
      %c0_37 = arith.constant 0 : index
      %56 = vector.load %arg5[%c0_36, %c0_37] : memref<2x1xf32, #tpu.memory_space<vmem>>, vector<2x1xf32>
      %c0_38 = arith.constant 0 : index
      %c0_39 = arith.constant 0 : index
      %57 = vector.load %arg7[%c0_38, %c0_39] : memref<2x1xf32, #tpu.memory_space<vmem>>, vector<2x1xf32>
      %58 = arith.subf %56, %57 : vector<2x1xf32>
      %59 = arith.addf %55, %58 : vector<2x1xf32>
      %c0_40 = arith.constant 0 : index
      %c0_41 = arith.constant 0 : index
      %60 = vector.load %arg6[%c0_40, %c0_41] : memref<2x1xf32, #tpu.memory_space<vmem>>, vector<2x1xf32>
      %61 = math.log %60 : vector<2x1xf32>
      %62 = arith.addf %59, %61 : vector<2x1xf32>
      %63 = math.log %52 : vector<2x1xf32>
      %64 = arith.subf %62, %63 : vector<2x1xf32>
      %65 = vector.shape_cast %64 : vector<2x1xf32> to vector<1x2x1xf32>
      %cst_42 = arith.constant dense<0.000000e+00> : vector<1xf32>
      %66 = vector.multi_reduction <add>, %65, %cst_42 [1, 2] : vector<1x2x1xf32> to vector<1xf32>
      %67 = vector.shape_cast %66 : vector<1xf32> to vector<1x1x1xf32>
      %68 = vector.extract %67[0, 0, 0] : f32 from vector<1x1x1xf32>
      %69 = vector.broadcast %68 : f32 to vector<1x8x128xf32>
      %c0_43 = arith.constant 0 : index
      %c0_44 = arith.constant 0 : index
      %c0_45 = arith.constant 0 : index
      %70 = vector.load %arg4[%c0_43, %c0_44, %c0_45] : memref<1x8x128xf32, #tpu.memory_space<vmem>>, vector<1x8x128xf32>
      tpu.vector_store %arg4[%c0_43, %c0_44, %c0_45], %69 {strides = array<i32>} : memref<1x8x128xf32, #tpu.memory_space<vmem>>, vector<1x8x128xf32>,
    } else {
    }
    return
  }
  func.func @transform_0(%arg0: i32, %arg1: i32) -> (i32, i32) {
    %c0_i32 = arith.constant 0 : i32
    return %arg0, %arg1 : i32, i32
  }
  func.func @transform_1(%arg0: i32, %arg1: i32) -> (i32, i32) {
    %c0_i32 = arith.constant 0 : i32
    return %arg0, %arg1 : i32, i32
  }
  func.func @transform_2(%arg0: i32, %arg1: i32) -> (i32, i32, i32) {
    %c0_i32 = arith.constant 0 : i32
    %c0_i32_0 = arith.constant 0 : i32
    %c0_i32_1 = arith.constant 0 : i32
    return %arg0, %c0_i32, %c0_i32_0 : i32, i32, i32
  }
}

</mosaic_0001>

<llo_original>
// kernel: tpu_custom_call.1
$region0: #{tpu_custom_call.1}
  #allocation0 [shape = 'u32[]', space=smem, size = 0x4, offset = 0x4, fixed_abs, tag = 'smem constant byte address 0x4 - core index']
  #allocation1 [shape = 'u32[144,128]{1,0:T(1,128)}', space=vmem, size = 0x12000, scoped, tag = 'internal scratch']
  #allocation2 [shape = 'f32[2,1]{1,0:T(2,128)}', space=vmem, size = 0x400, scoped, tag = 'scratch operand']
  #allocation3 [shape = 'f32[2,1]{1,0:T(2,128)}', space=vmem, size = 0x400, scoped, tag = 'scratch operand']
  #allocation4 [shape = 'f32[2,1]{1,0:T(2,128)}', space=vmem, size = 0x400, scoped, tag = 'scratch operand']
  #allocation5 [shape = 'f32[2,1]{1,0:T(2,128)}', space=vmem, size = 0x400, scoped, tag = 'scratch operand']
  #allocation6 [shape = 'f32[2,1]{1,0:T(2,128)}', space=vmem, size = 0x400, scoped, tag = 'scratch operand']
  %s0 = inlined_call_operand.hbm [shape: f32[2,16], index: 0, kind: input, shape index: {}]
  %s1 = inlined_call_operand.hbm [shape: f32[2,16], index: 1, kind: input, shape index: {}]
  %s2 = inlined_call_operand.hbm [shape: f32[1,8,128], index: 2, kind: output, shape index: {}]
  %s3 = sld [smem:[#allocation0]]
  $region34: #{tpu_custom_call.1} parent=0
    _
  %s5 = ssub.s32 1, %s3
  %s6 = scalar_select 0, %s5, %s3
  $region1: #{tpu_custom_call.1} parent=0
    #allocation7 [shape = 'u8[1024]{0}', space=vmem, size = 0x400, scoped, tag = 'input window, operand 0, single buffered']
    #allocation8 [shape = 's32[1]{0}', space=sflag, size = 0x4, scoped, tag = 'scoped memory for tpu_custom_call.1']
    #allocation9 [shape = 's32[1]{0}', space=sflag, size = 0x4, scoped, tag = 'scoped memory for tpu_custom_call.1']
    #allocation10 [shape = 'u8[1024]{0}', space=vmem, size = 0x400, scoped, tag = 'input window, operand 1, single buffered']
    #allocation11 [shape = 's32[1]{0}', space=sflag, size = 0x4, scoped, tag = 'scoped memory for tpu_custom_call.1']
    #allocation12 [shape = 'u8[4096]{0}', space=vmem, size = 0x1000, scoped, tag = 'output window, operand 0, single buffered']
    %7 = vsyncpa [#allocation8], 0
    %8 = vsyncpa [#allocation11], 0
    %9 = vsyncpa [#allocation9], 0
    // Predicated region
    $region2: #{tpu_custom_call.1} parent=1 // pred_check
      _
    $region3: #{tpu_custom_call.1} parent=1 // pred_check_branch
      %11 = sbr.rel (0) target = $region5
    $region4: #{tpu_custom_call.1} parent=1 // pred_region
      %s13 = ssub.s32 32, 32
      %14 = vsyncadd [#allocation8], %s13
      %s16 = sshll.u32 [#allocation7], 4
      %s17 = int_to_ptr.vmem [resolvable:$true] %s16
      %19 = dma.hbm_to_vmem [thread:$0]  %s0, 32, %s17, [#allocation8]
    $region5: #{tpu_custom_call.1} parent=1 // pred_fallthru
      _
    // Predicated region
    $region6: #{tpu_custom_call.1} parent=1 // pred_check
      _
    $region7: #{tpu_custom_call.1} parent=1 // pred_check_branch
      %21 = sbr.rel (0) target = $region9
    $region8: #{tpu_custom_call.1} parent=1 // pred_region
      %s23 = ssub.s32 32, 32
      %24 = vsyncadd [#allocation11], %s23
      %s26 = sshll.u32 [#allocation10], 4
      %s27 = int_to_ptr.vmem [resolvable:$true] %s26
      %29 = dma.hbm_to_vmem [thread:$0]  %s1, 32, %s27, [#allocation11]
    $region9: #{tpu_custom_call.1} parent=1 // pred_fallthru
      _
    // Predicated region
    $region10: #{tpu_custom_call.1} parent=1 // pred_check
      _
    $region11: #{tpu_custom_call.1} parent=1 // pred_check_branch
      %31 = sbr.rel (0) target = $region13
    $region12: #{tpu_custom_call.1} parent=1 // pred_region
      %32 = dma.done [#allocation8], 32
    $region13: #{tpu_custom_call.1} parent=1 // pred_fallthru
      _
    // Predicated region
    $region14: #{tpu_custom_call.1} parent=1 // pred_check
      _
    $region15: #{tpu_custom_call.1} parent=1 // pred_check_branch
      %34 = sbr.rel (0) target = $region17
    $region16: #{tpu_custom_call.1} parent=1 // pred_region
      %35 = dma.done [#allocation11], 32
    $region17: #{tpu_custom_call.1} parent=1 // pred_fallthru
      _
    %p36 = scmp.eq.s32.totalorder 0, 0
    // Predicated region
    $region18: #{tpu_custom_call.1} parent=1 // pred_check
      %p37 = pneg %p36
    $region19: #{tpu_custom_call.1} parent=1 // pred_check_branch
      %39 = sbr.rel (%p37) target = $region21
    $region20: #{tpu_custom_call.1} parent=1 // pred_region
      %vm40 = vcmask 1024
      %41 = vst.msk [vmem:[#allocation2] sm:$0x3] %vm40, -inf
      %42 = vst.msk [vmem:[#allocation4] sm:$0x3] %vm40, -inf
      %43 = vst.msk [vmem:[#allocation3] sm:$0x3] %vm40, 0.0
      %44 = vst.msk [vmem:[#allocation5] sm:$0x3] %vm40, 0.0
      %45 = vst.msk [vmem:[#allocation6] sm:$0x3] %vm40, 0.0
    $region21: #{tpu_custom_call.1} parent=1 // pred_fallthru
      _
    %v46 = vld [vmem:[#allocation7] sm:$0x3]
    %v47 = vmul.f32 %v46, 0.25
    %v48 = vld [vmem:[#allocation10] sm:$0x3]
    %v49 = vmul.f32 %v48, 0.25
    %v50 = vld [vmem:[#allocation4] sm:$0x3]
    %vm51 = vcmask 123904
    %v52 = vsel %vm51, %v49, -inf
    %53 = vmax.xlane.f32.xlu0 %v52
    %v54 = vpop.xlane.xlu0 %53
    %v55 = vmax.f32 %v50, %v54
    %v56 = vsub.f32 %v50, %v55
    %v57 = vmul.f32 %v56, 1.442695
    %v58 = vpow.pop %v57
    %60 = vset.pattern.permute.xlu0 0
    %61 = vperm.xlu0 %60, %v55
    %v62 = vpop.permute.xlu0 %61
    %v64 = vsub.f32 %v49, %v62
    %v65 = vmul.f32 %v64, 1.442695
    %v66 = vpow.pop %v65
    %v67 = vld [vmem:[#allocation5] sm:$0x3]
    %v68 = vmul.f32 %v58, %v67
    %v69 = vsel %vm51, %v66, 0.0
    %70 = vadd.xlane.f32.xlu0 %v69
    %v71 = vpop.xlane.xlu0 %70
    %v72 = vadd.f32 %v68, %v71
    %vm73 = vcmask 1024
    %74 = vst.msk [vmem:[#allocation5] sm:$0x3] %vm73, %v72
    %v75 = vld [vmem:[#allocation6] sm:$0x3]
    %v76 = vmul.f32 %v58, %v75
    %v77 = vsub.f32 %v49, %v47
    %v78 = vmul.f32 %v66, %v77
    %v79 = vsel %vm51, %v78, 0.0
    %80 = vadd.xlane.f32.xlu0 %v79
    %v81 = vpop.xlane.xlu0 %80
    %v82 = vadd.f32 %v76, %v81
    %83 = vst.msk [vmem:[#allocation6] sm:$0x3] %vm73, %v82
    %84 = vst.msk [vmem:[#allocation4] sm:$0x3] %vm73, %v55
    %v85 = vld [vmem:[#allocation2] sm:$0x3]
    %v86 = vsel %vm51, %v47, -inf
    %87 = vmax.xlane.f32.xlu0 %v86
    %v88 = vpop.xlane.xlu0 %87
    %v89 = vmax.f32 %v85, %v88
    %v90 = vsub.f32 %v85, %v89
    %v91 = vmul.f32 %v90, 1.442695
    %v92 = vpow.pop %v91
    %v93 = vld [vmem:[#allocation3] sm:$0x3]
    %v94 = vmul.f32 %v92, %v93
    %96 = vset.pattern.permute.xlu0 0
    %97 = vperm.xlu0 %96, %v89
    %v98 = vpop.permute.xlu0 %97
    %v100 = vsub.f32 %v47, %v98
    %v101 = vmul.f32 %v100, 1.442695
    %v102 = vpow.pop %v101
    %v103 = vsel %vm51, %v102, 0.0
    %104 = vadd.xlane.f32.xlu0 %v103
    %v105 = vpop.xlane.xlu0 %104
    %v106 = vadd.f32 %v94, %v105
    %107 = vst.msk [vmem:[#allocation3] sm:$0x3] %vm73, %v106
    %108 = vst.msk [vmem:[#allocation2] sm:$0x3] %vm73, %v89
    // Predicated region
    $region22: #{tpu_custom_call.1} parent=1 // pred_check
      %p109 = pneg %p36
    $region23: #{tpu_custom_call.1} parent=1 // pred_check_branch
      %111 = sbr.rel (%p109) target = $region25
    $region24: #{tpu_custom_call.1} parent=1 // pred_region
      %v112 = vld [vmem:[#allocation5] sm:$0x3]
      %v113 = vld [vmem:[#allocation6] sm:$0x3]
      %v114 = vrcp.pop %v112
      %v115 = vmul.f32 %v113, %v114
      %v116 = vld [vmem:[#allocation2] sm:$0x3]
      %v117 = vld [vmem:[#allocation4] sm:$0x3]
      %v118 = vsub.f32 %v116, %v117
      %v119 = vadd.f32 %v115, %v118
      %v120 = vld [vmem:[#allocation3] sm:$0x3]
      %v121 = vlog2.pop %v120
      %v122 = vmul.f32 %v121, 0.6931472
      %v123 = vadd.f32 %v119, %v122
      %v124 = vlog2.pop %v112
      %v125 = vmul.f32 %v124, 0.6931472
      %v126 = vsub.f32 %v123, %v125
      %v127 = vsel %vm73, %v126, 0.0
      %128 = vadd.xlane.f32.xlu0 %v127
      %v129 = vpop.xlane.xlu0 %128
      %v130 = vrot.slane %v129, 4
      %v131 = vadd.f32 %v129, %v130
      %v132 = vrot.slane %v131, 2
      %v133 = vadd.f32 %v131, %v132
      %v134 = vrot.slane %v133, 1
      %v135 = vadd.f32 %v133, %v134
      %s136 = vtos %v135
      %v137 = vstv %s136
      %138 = vst [vmem:[#allocation12] sm:$0xff] %v137
    $region25: #{tpu_custom_call.1} parent=1 // pred_fallthru
      _
    // Predicated region
    $region26: #{tpu_custom_call.1} parent=1 // pred_check
      _
    $region27: #{tpu_custom_call.1} parent=1 // pred_check_branch
      %140 = sbr.rel (0) target = $region29
    $region28: #{tpu_custom_call.1} parent=1 // pred_region
      %s142 = ssub.s32 128, 128
      %143 = vsyncadd [#allocation9], %s142
      %s145 = sshll.u32 [#allocation12], 4
      %s146 = int_to_ptr.vmem [resolvable:$true] %s145
      %148 = dma.vmem_to_hbm [thread:$0]  %s146, 128, %s2, [#allocation9]
    $region29: #{tpu_custom_call.1} parent=1 // pred_fallthru
      _
    // Predicated region
    $region30: #{tpu_custom_call.1} parent=1 // pred_check
      _
    $region31: #{tpu_custom_call.1} parent=1 // pred_check_branch
      %150 = sbr.rel (0) target = $region33
    $region32: #{tpu_custom_call.1} parent=1 // pred_region
      %151 = dma.done [#allocation9], 128
    $region33: #{tpu_custom_call.1} parent=1 // pred_fallthru
      _
    %152 = vsyncpa [#allocation8], 1
    %153 = vsyncpa [#allocation11], 1
    %154 = vsyncpa [#allocation9], 1

</llo_original>
